<compile_context>
chip_gen: v7x
topology: tpu7x:2x2x1
jax: 0.10.0
libtpu: 0.0.40
codegen_flags: <defaults>
</compile_context>

<pallas_src>
import functools

import numpy as np
import jax
import jax.numpy as jnp
from jax.experimental import pallas as pl
from jax.experimental.pallas import tpu as pltpu


# Conservative per-generation sizing (review): working set <= 24 MiB fits the
# scoped-VMEM story on v5e (raise past 16 MiB default), v6e (32 MiB default)
# and v7x (64 MiB physical); the explicit limit below makes the larger tiles
# compile everywhere.
_VMEM_WORKING_BUDGET = 24 * 1024 * 1024
_VMEM_LIMIT_BYTES = 40 * 1024 * 1024

_VMEM_SPEC = pl.BlockSpec(memory_space=pltpu.MemorySpace.VMEM)


def _round_up(n, m):
    return ((n + m - 1) // m) * m


def _next_pow2(n):
    return 1 << (max(int(n), 1) - 1).bit_length() if n > 1 else 1


# ----------------------------- Pallas kernels ------------------------------ #

def _fused_kernel(feat_ref, mus_ref, sigs_ref, out_ref,
                  mean_sc, std_sc, minsq_sc, *, t_k, inv_d, inv_dm1):
    """Grid axis 0 walks queue tiles (usually a single step).

    Scratch:
      mean_sc / std_sc : (B, 128) stats pre-broadcast across lanes.
      minsq_sc         : (B, 128) running elementwise min of squared distance.
    """
    qi = pl.program_id(0)

    @pl.when(qi == 0)
    def _init():
        x = feat_ref[...].astype(jnp.float32)                       # (B, D)
        mean = jnp.sum(x, axis=1, keepdims=True) * inv_d             # (B, 1)
        xc = x - mean                                                # two-pass variance
        var = jnp.sum(xc * xc, axis=1, keepdims=True) * inv_dm1      # unbiased (ddof=1)
        std = jnp.sqrt(var)
        # Pre-broadcast to full 128-lane slabs: unmasked full-vreg scratch
        # stores, and no per-step re-broadcasts in the distance loop.
        mean_sc[...] = jnp.broadcast_to(mean, mean_sc.shape)
        std_sc[...] = jnp.broadcast_to(std, std_sc.shape)
        minsq_sc[...] = jnp.full(minsq_sc.shape, jnp.inf, minsq_sc.dtype)

    # Sublane-dense (TR, 128) queue tile vs per-row stats -> (B, TR, 128)
    # squared 2-Wasserstein distances, folded over TR into the (B, 128)
    # running min (VPU elementwise mins; no cross-lane work per step).
    mu = mus_ref[...][None, :, :]                                     # (1, TR, 128)
    sg = sigs_ref[...][None, :, :]
    dm = mean_sc[...][:, None, :] - mu                                # (B, TR, 128)
    ds = std_sc[...][:, None, :] - sg
    dsq = dm * dm + ds * ds
    minsq_sc[...] = jnp.minimum(minsq_sc[...], jnp.min(dsq, axis=1))  # (B, 128)

    @pl.when(qi == pl.num_programs(0) - 1)
    def _finalize():
        minsq = jnp.min(minsq_sc[...], axis=1, keepdims=True)         # (B, 1) single xlane reduce
        mind = jnp.sqrt(minsq)
        t = jnp.exp(-t_k * mind)
        # Pack mean/std/min_dist/T into one lane-dense (B, 128) slab -> a
        # single unmasked store instead of four masked (B, 1) stores.
        lane = jax.lax.broadcasted_iota(jnp.int32, out_ref.shape, 1)
        packed = jnp.where(lane == 0, mean_sc[...],
                 jnp.where(lane == 1, std_sc[...],
                 jnp.where(lane == 2, mind,
                 jnp.where(lane == 3, t, 0.0))))
        out_ref[...] = packed


def _stats_kernel(feat_ref, out_ref, *, inv_d, inv_dm1):
    """Stats-only path (append without modify_T). Lane-dense packed output."""
    x = feat_ref[...].astype(jnp.float32)                             # (B, D)
    mean = jnp.sum(x, axis=1, keepdims=True) * inv_d
    xc = x - mean
    var = jnp.sum(xc * xc, axis=1, keepdims=True) * inv_dm1
    std = jnp.sqrt(var)
    lane = jax.lax.broadcasted_iota(jnp.int32, out_ref.shape, 1)
    out_ref[...] = jnp.where(lane == 0, mean, jnp.where(lane == 1, std, 0.0))


# ------------------------------ Pallas wrappers ----------------------------- #

def _choose_tile_rows(b_pad, d, rows):
    """Queue-tile height (rows of 128 entries) sized against the VMEM budget."""
    # Per row: 2 queue arrays x 2 pipeline buffers x 128 lanes x 4 B, plus
    # ~3 live (B, TR, 128) f32 elementwise temporaries (dm/ds/dsq).
    bytes_per_row = (2 * 2 * 128 * 4) + (3 * b_pad * 128 * 4)
    fixed = 2 * b_pad * d * 4 + 5 * b_pad * 128 * 4     # resident features + scratch/out
    avail = max(_VMEM_WORKING_BUDGET - fixed, 8 * bytes_per_row)
    tr = min(rows, max(8, avail // bytes_per_row))
    return int(max(8, (tr // 8) * 8))


def feature_stats(features):
    """features: (B, D) -> (means, stds), each (B,) float32 (ddof=1 std)."""
    b, d = features.shape
    b_pad = _round_up(b, 8)
    if b_pad != b:
        features = jnp.pad(features, ((0, b_pad - b), (0, 0)))
    packed = pl.pallas_call(
        functools.partial(_stats_kernel,
                          inv_d=1.0 / float(d),
                          inv_dm1=1.0 / float(max(d - 1, 1))),
        out_shape=jax.ShapeDtypeStruct((b_pad, 128), jnp.float32),
        in_specs=[_VMEM_SPEC],
        out_specs=_VMEM_SPEC,
    )(features)
    return packed[:b, 0], packed[:b, 1]


def fused_stats_wasserstein(features, queue_mus2d, queue_sigmas2d, t_k):
    """features (B, D); queue_* (rows, 128) f32, +inf padded.

    Returns (means, stds, min_dist, T), each (B,) float32.
    """
    b, d = features.shape
    rows = queue_mus2d.shape[0]

    # Sublane-dense batch: pad B to a multiple of 8, slice the packed output.
    b_pad = _round_up(b, 8)
    if b_pad != b:
        features = jnp.pad(features, ((0, b_pad - b), (0, 0)))

    tr = _choose_tile_rows(b_pad, d, rows)
    rows_pad = pl.cdiv(rows, tr) * tr
    mus, sigs = queue_mus2d, queue_sigmas2d
    if rows_pad != rows:
        # Rare fallback path only; padding value +inf can never win the min.
        mus = jnp.pad(mus, ((0, rows_pad - rows), (0, 0)), constant_values=np.inf)
        sigs = jnp.pad(sigs, ((0, rows_pad - rows), (0, 0)), constant_values=np.inf)

    kernel = functools.partial(_fused_kernel,
                               t_k=float(t_k),
                               inv_d=1.0 / float(d),
                               inv_dm1=1.0 / float(max(d - 1, 1)))
    packed = pl.pallas_call(
        kernel,
        grid=(rows_pad // tr,),
        in_specs=[
            pl.BlockSpec((b_pad, d), lambda qi: (0, 0)),     # features: VMEM-resident
            pl.BlockSpec((tr, 128), lambda qi: (qi, 0)),     # queue mus tile (sublane-dense)
            pl.BlockSpec((tr, 128), lambda qi: (qi, 0)),     # queue sigmas tile
        ],
        out_specs=pl.BlockSpec((b_pad, 128), lambda qi: (0, 0)),
        out_shape=jax.ShapeDtypeStruct((b_pad, 128), jnp.float32),
        scratch_shapes=[
            pltpu.VMEM((b_pad, 128), jnp.float32),   # mean (lane-broadcast)
            pltpu.VMEM((b_pad, 128), jnp.float32),   # std  (lane-broadcast)
            pltpu.VMEM((b_pad, 128), jnp.float32),   # running min of squared distance
        ],
        compiler_params=pltpu.CompilerParams(
            dimension_semantics=("arbitrary",),
            vmem_limit_bytes=_VMEM_LIMIT_BYTES),
    )(features, mus, sigs)
    return packed[:b, 0], packed[:b, 1], packed[:b, 2], packed[:b, 3]


# ------------------------------- Module port -------------------------------- #

class FeatherStatisticAppend:
    """JAX/Pallas port of Feather_statistic_append.

    The statistics queue is a persistent, +inf padded, sublane-dense (rows, 128)
    device ring buffer: appends scatter only the new entries (no per-call 50k
    re-upload), and padded slots can never win the Wasserstein min.
    """

    def __init__(self, confidence_thresh=0.0, T_max=100, T_k=10, rightT=1,
                 queue_length=50000, T_scale=0):
        self.confidence_thresh = confidence_thresh
        self.T_max = T_max
        self.T_k = T_k
        self.rightT = rightT
        self.queue_length = int(queue_length)
        self.T_scale = T_scale

        cap = _round_up(self.queue_length, 8 * 128)      # rows multiple of 8
        self._rows_cap = cap // 128
        self.queue_mus = jnp.full((self._rows_cap, 128), np.inf, jnp.float32)
        self.queue_sigmas = jnp.full((self._rows_cap, 128), np.inf, jnp.float32)
        self._count = 0
        self._head = 0

    # -- device-side ring-buffer append (only the new entries move to device) --
    def append(self, mus, sigmas):
        mus = np.asarray(mus, dtype=np.float32).reshape(-1)
        sigmas = np.asarray(sigmas, dtype=np.float32).reshape(-1)
        n = int(mus.shape[0])
        if n == 0:
            return
        if n > self.queue_length:
            mus, sigmas, n = mus[-self.queue_length:], sigmas[-self.queue_length:], self.queue_length
        pos = (self._head + np.arange(n)) % self.queue_length
        r, c = pos // 128, pos % 128
        self.queue_mus = self.queue_mus.at[r, c].set(jnp.asarray(mus))
        self.queue_sigmas = self.queue_sigmas.at[r, c].set(jnp.asarray(sigmas))
        self._head = int((self._head + n) % self.queue_length)
        self._count = int(min(self._count + n, self.queue_length))

    def _queue_views(self):
        # Only process rows that can contain real entries; quantize to powers of
        # two so at most ~log2(rows_cap) distinct kernel shapes ever compile.
        rows_needed = max(8, -(-self._count // 128))
        rows_used = min(self._rows_cap, max(8, _next_pow2(rows_needed)))
        return self.queue_mus[:rows_used], self.queue_sigmas[:rows_used]

    def __call__(self, features, labels, pred, confidence=None, modify_T=False,
                 append=True, return_distance=False):
        T = jnp.ones_like(labels)
        min_distances = jnp.zeros_like(labels)
        correctly_classified = jnp.zeros_like(labels)
        means = stds = None

        if confidence is not None:
            if pred is None:
                pred = labels
            correct_mask = (labels == pred) & (confidence > self.confidence_thresh)
            correctly_classified = jnp.where(correct_mask, 1, 0).astype(labels.dtype)

            if modify_T and self._count > 0:
                q_mus, q_sigs = self._queue_views()
                # Single fused Pallas kernel: stats + queue-tiled Wasserstein min + T.
                means, stds, min_d, t_d = fused_stats_wasserstein(
                    features, q_mus, q_sigs, self.T_k)
                # Original early-out when every sample is correctly classified,
                # preserved as a traced select (no device->host round-trip).
                all_correct = (jnp.sum(correctly_classified)
                               == correctly_classified.size)
                min_distances = jnp.where(all_correct, jnp.zeros_like(min_d), min_d)
                T = jnp.where(all_correct, jnp.ones_like(t_d), t_d)
                if self.T_scale == 1:
                    mn, mx = jnp.min(min_distances), jnp.max(min_distances)
                    t_scaled = 1.0 - (min_distances - mn) / (mx - mn + 1e-08)
                    T = jnp.where(all_correct, jnp.ones_like(t_scaled), t_scaled)
            else:
                means, stds = feature_stats(features)   # stats-only Pallas kernel

        if append and means is not None:
            # TODO(synk): ragged boolean-mask gather still syncs B scalars to
            # host; a fully in-kernel ring append (input_output_aliases) would
            # remove it but changes the module's state model.
            mask = np.asarray(correctly_classified) == 1
            self.append(np.asarray(means)[mask], np.asarray(stds)[mask])

        if return_distance:
            return min_distances
        return T


# ---------------------------------- Demo ------------------------------------ #

if __name__ == "__main__":
    key = jax.random.PRNGKey(0)
    k_feat, k_lab, k_conf, k_q1, k_q2 = jax.random.split(key, 5)

    B, D, Q = 4, 128, 300
    features = jax.random.normal(k_feat, (B, D), dtype=jnp.float32)
    labels = jax.random.randint(k_lab, (B,), 0, 10, dtype=jnp.int32)
    pred = labels.at[0].set((labels[0] + 1) % 10)      # make not-all-correct
    confidence = jax.random.uniform(k_conf, (B,), dtype=jnp.float32)

    model = FeatherStatisticAppend(confidence_thresh=0.0, T_k=10, T_scale=0)
    # Deterministically prime the device-side statistics queue (synthetic).
    q_mus_np = np.asarray(jax.random.normal(k_q1, (Q,), dtype=jnp.float32) * 0.1)
    q_sigs_np = np.asarray(1.0 + 0.1 * jax.random.normal(k_q2, (Q,), dtype=jnp.float32))
    model.append(q_mus_np, q_sigs_np)

    T = model(features, labels, pred, confidence=confidence,
              modify_T=True, append=True, return_distance=False)
    T = jax.block_until_ready(T)

    # Reference check in plain JAX against the queue state at call time.
    means_ref = jnp.mean(features, axis=1)
    stds_ref = jnp.std(features, axis=1, ddof=1)
    q_mus = jnp.asarray(q_mus_np, dtype=jnp.float32)
    q_sigs = jnp.asarray(q_sigs_np, dtype=jnp.float32)
    wd = jnp.sqrt((means_ref[:, None] - q_mus[None, :]) ** 2
                  + (stds_ref[:, None] - q_sigs[None, :]) ** 2)
    T_ref = jnp.exp(-model.T_k * jnp.min(wd, axis=1))
    np.testing.assert_allclose(np.asarray(T), np.asarray(T_ref),
                               rtol=1e-3, atol=1e-6)

    # Second call exercises the ring-buffer append from call 1 + distance path.
    dists = model(features, labels, pred, confidence=confidence,
                  modify_T=True, append=False, return_distance=True)
    dists = jax.block_until_ready(dists)
    assert dists.shape == (B,) and bool(np.all(np.isfinite(np.asarray(dists))))

    print("KERNEL_OK")
</pallas_src>

<mosaic_0001>
module attributes {stable_mosaic.version = 11 : i64} {
  func.func @_fused_kernel(%arg0: i32, %arg1: memref<8x128xf32, #tpu.memory_space<vmem>>, %arg2: memref<8x128xf32, #tpu.memory_space<vmem>>, %arg3: memref<8x128xf32, #tpu.memory_space<vmem>>, %arg4: memref<8x128xf32, #tpu.memory_space<vmem>>, %arg5: memref<8x128xf32, #tpu.memory_space<vmem>>, %arg6: memref<8x128xf32, #tpu.memory_space<vmem>>, %arg7: memref<8x128xf32, #tpu.memory_space<vmem>>) attributes {dimension_semantics = [#tpu.dimension_semantics<arbitrary>], iteration_bounds = array<i64: 1>, scalar_prefetch = 0 : i64, scratch_operands = 3 : i64, tpu.core_type = #tpu.core_type<tc>, window_params = [{pipeline_mode = #tpu.pipeline_mode<synchronous>, transform_indices = @transform_0, window_bounds = array<i64: 8, 128>}, {transform_indices = @transform_1, window_bounds = array<i64: 8, 128>}, {transform_indices = @transform_2, window_bounds = array<i64: 8, 128>}, {pipeline_mode = #tpu.pipeline_mode<synchronous>, transform_indices = @transform_3, window_bounds = array<i64: 8, 128>}]} {
    %c0_i32 = arith.constant 0 : i32
    %0 = arith.cmpi eq, %arg0, %c0_i32 : i32
    %1 = arith.extui %0 : i1 to i32
    %c0_i32_0 = arith.constant 0 : i32
    %2 = arith.cmpi ne, %1, %c0_i32_0 : i32
    scf.if %2 {
      %c0_14 = arith.constant 0 : index
      %c0_15 = arith.constant 0 : index
      %27 = vector.load %arg1[%c0_14, %c0_15] : memref<8x128xf32, #tpu.memory_space<vmem>>, vector<8x128xf32>
      %cst_16 = arith.constant dense<0.000000e+00> : vector<8xf32>
      %28 = vector.multi_reduction <add>, %27, %cst_16 [1] : vector<8x128xf32> to vector<8xf32>
      %29 = vector.shape_cast %28 : vector<8xf32> to vector<8x1xf32>
      %cst_17 = arith.constant 7.812500e-03 : f32
      %30 = vector.broadcast %cst_17 : f32 to vector<8x1xf32>
      %31 = arith.mulf %29, %30 : vector<8x1xf32>
      %32 = vector.broadcast %31 : vector<8x1xf32> to vector<8x128xf32>
      %33 = arith.subf %27, %32 : vector<8x128xf32>
      %34 = arith.mulf %33, %33 : vector<8x128xf32>
      %cst_18 = arith.constant dense<0.000000e+00> : vector<8xf32>
      %35 = vector.multi_reduction <add>, %34, %cst_18 [1] : vector<8x128xf32> to vector<8xf32>
      %36 = vector.shape_cast %35 : vector<8xf32> to vector<8x1xf32>
      %cst_19 = arith.constant 0.00787401571 : f32
      %37 = vector.broadcast %cst_19 : f32 to vector<8x1xf32>
      %38 = arith.mulf %36, %37 : vector<8x1xf32>
      %39 = math.sqrt %38 : vector<8x1xf32>
      %40 = vector.shape_cast %31 : vector<8x1xf32> to vector<8x1xf32>
      %41 = vector.broadcast %40 : vector<8x1xf32> to vector<8x128xf32>
      %c0_20 = arith.constant 0 : index
      %c0_21 = arith.constant 0 : index
      %42 = vector.load %arg5[%c0_20, %c0_21] : memref<8x128xf32, #tpu.memory_space<vmem>>, vector<8x128xf32>
      tpu.vector_store %arg5[%c0_20, %c0_21], %41 {strides = array<i32>} : memref<8x128xf32, #tpu.memory_space<vmem>>, vector<8x128xf32>,
      %43 = vector.shape_cast %39 : vector<8x1xf32> to vector<8x1xf32>
      %44 = vector.broadcast %43 : vector<8x1xf32> to vector<8x128xf32>
      %c0_22 = arith.constant 0 : index
      %c0_23 = arith.constant 0 : index
      %45 = vector.load %arg6[%c0_22, %c0_23] : memref<8x128xf32, #tpu.memory_space<vmem>>, vector<8x128xf32>
      tpu.vector_store %arg6[%c0_22, %c0_23], %44 {strides = array<i32>} : memref<8x128xf32, #tpu.memory_space<vmem>>, vector<8x128xf32>,
      %cst_24 = arith.constant 0x7F800000 : f32
      %46 = vector.broadcast %cst_24 : f32 to vector<8x128xf32>
      %c0_25 = arith.constant 0 : index
      %c0_26 = arith.constant 0 : index
      %47 = vector.load %arg7[%c0_25, %c0_26] : memref<8x128xf32, #tpu.memory_space<vmem>>, vector<8x128xf32>
      tpu.vector_store %arg7[%c0_25, %c0_26], %46 {strides = array<i32>} : memref<8x128xf32, #tpu.memory_space<vmem>>, vector<8x128xf32>,
    } else {
    }
    %c0 = arith.constant 0 : index
    %c0_1 = arith.constant 0 : index
    %3 = vector.load %arg2[%c0, %c0_1] : memref<8x128xf32, #tpu.memory_space<vmem>>, vector<8x128xf32>
    %4 = vector.shape_cast %3 : vector<8x128xf32> to vector<1x8x128xf32>
    %c0_2 = arith.constant 0 : index
    %c0_3 = arith.constant 0 : index
    %5 = vector.load %arg3[%c0_2, %c0_3] : memref<8x128xf32, #tpu.memory_space<vmem>>, vector<8x128xf32>
    %6 = vector.shape_cast %5 : vector<8x128xf32> to vector<1x8x128xf32>
    %c0_4 = arith.constant 0 : index
    %c0_5 = arith.constant 0 : index
    %7 = vector.load %arg5[%c0_4, %c0_5] : memref<8x128xf32, #tpu.memory_space<vmem>>, vector<8x128xf32>
    %8 = vector.shape_cast %7 : vector<8x128xf32> to vector<8x1x128xf32>
    %9 = vector.broadcast %8 : vector<8x1x128xf32> to vector<8x8x128xf32>
    %10 = vector.broadcast %4 : vector<1x8x128xf32> to vector<8x8x128xf32>
    %11 = arith.subf %9, %10 : vector<8x8x128xf32>
    %c0_6 = arith.constant 0 : index
    %c0_7 = arith.constant 0 : index
    %12 = vector.load %arg6[%c0_6, %c0_7] : memref<8x128xf32, #tpu.memory_space<vmem>>, vector<8x128xf32>
    %13 = vector.shape_cast %12 : vector<8x128xf32> to vector<8x1x128xf32>
    %14 = vector.broadcast %13 : vector<8x1x128xf32> to vector<8x8x128xf32>
    %15 = vector.broadcast %6 : vector<1x8x128xf32> to vector<8x8x128xf32>
    %16 = arith.subf %14, %15 : vector<8x8x128xf32>
    %17 = arith.mulf %11, %11 : vector<8x8x128xf32>
    %18 = arith.mulf %16, %16 : vector<8x8x128xf32>
    %19 = arith.addf %17, %18 : vector<8x8x128xf32>
    %c0_8 = arith.constant 0 : index
    %c0_9 = arith.constant 0 : index
    %20 = vector.load %arg7[%c0_8, %c0_9] : memref<8x128xf32, #tpu.memory_space<vmem>>, vector<8x128xf32>
    %cst = arith.constant dense<0x7F800000> : vector<8x128xf32>
    %21 = vector.multi_reduction <minimumf>, %19, %cst [1] : vector<8x8x128xf32> to vector<8x128xf32>
    %22 = arith.minimumf %20, %21 : vector<8x128xf32>
    %c0_10 = arith.constant 0 : index
    %c0_11 = arith.constant 0 : index
    %23 = vector.load %arg7[%c0_10, %c0_11] : memref<8x128xf32, #tpu.memory_space<vmem>>, vector<8x128xf32>
    tpu.vector_store %arg7[%c0_10, %c0_11], %22 {strides = array<i32>} : memref<8x128xf32, #tpu.memory_space<vmem>>, vector<8x128xf32>,
    %c0_i32_12 = arith.constant 0 : i32
    %24 = arith.cmpi eq, %arg0, %c0_i32_12 : i32
    %25 = arith.extui %24 : i1 to i32
    %c0_i32_13 = arith.constant 0 : i32
    %26 = arith.cmpi ne, %25, %c0_i32_13 : i32
    scf.if %26 {
      %c0_14 = arith.constant 0 : index
      %c0_15 = arith.constant 0 : index
      %27 = vector.load %arg7[%c0_14, %c0_15] : memref<8x128xf32, #tpu.memory_space<vmem>>, vector<8x128xf32>
      %cst_16 = arith.constant dense<0x7F800000> : vector<8xf32>
      %28 = vector.multi_reduction <minimumf>, %27, %cst_16 [1] : vector<8x128xf32> to vector<8xf32>
      %29 = vector.shape_cast %28 : vector<8xf32> to vector<8x1xf32>
      %30 = math.sqrt %29 : vector<8x1xf32>
      %cst_17 = arith.constant -1.000000e+01 : f32
      %31 = vector.broadcast %cst_17 : f32 to vector<8x1xf32>
      %32 = arith.mulf %31, %30 : vector<8x1xf32>
      %33 = math.exp %32 : vector<8x1xf32>
      %34 = tpu.iota {dimensions = array<i32: 1>} : vector<8x128xi32>
      %c0_i32_18 = arith.constant 0 : i32
      %35 = vector.broadcast %c0_i32_18 : i32 to vector<8x128xi32>
      %36 = arith.cmpi eq, %34, %35 : vector<8x128xi32>
      %c0_19 = arith.constant 0 : index
      %c0_20 = arith.constant 0 : index
      %37 = vector.load %arg5[%c0_19, %c0_20] : memref<8x128xf32, #tpu.memory_space<vmem>>, vector<8x128xf32>
      %c1_i32 = arith.constant 1 : i32
      %38 = vector.broadcast %c1_i32 : i32 to vector<8x128xi32>
      %39 = arith.cmpi eq, %34, %38 : vector<8x128xi32>
      %c0_21 = arith.constant 0 : index
      %c0_22 = arith.constant 0 : index
      %40 = vector.load %arg6[%c0_21, %c0_22] : memref<8x128xf32, #tpu.memory_space<vmem>>, vector<8x128xf32>
      %c2_i32 = arith.constant 2 : i32
      %41 = vector.broadcast %c2_i32 : i32 to vector<8x128xi32>
      %42 = arith.cmpi eq, %34, %41 : vector<8x128xi32>
      %c3_i32 = arith.constant 3 : i32
      %43 = vector.broadcast %c3_i32 : i32 to vector<8x128xi32>
      %44 = arith.cmpi eq, %34, %43 : vector<8x128xi32>
      %cst_23 = arith.constant 0.000000e+00 : f32
      %45 = vector.shape_cast %33 : vector<8x1xf32> to vector<8x1xf32>
      %46 = vector.broadcast %45 : vector<8x1xf32> to vector<8x128xf32>
      %47 = vector.broadcast %cst_23 : f32 to vector<8x128xf32>
      %48 = arith.select %44, %46, %47 : vector<8x128xi1>, vector<8x128xf32>
      %49 = vector.shape_cast %30 : vector<8x1xf32> to vector<8x1xf32>
      %50 = vector.broadcast %49 : vector<8x1xf32> to vector<8x128xf32>
      %51 = arith.select %42, %50, %48 : vector<8x128xi1>, vector<8x128xf32>
      %52 = arith.select %39, %40, %51 : vector<8x128xi1>, vector<8x128xf32>
      %53 = arith.select %36, %37, %52 : vector<8x128xi1>, vector<8x128xf32>
      %c0_24 = arith.constant 0 : index
      %c0_25 = arith.constant 0 : index
      %54 = vector.load %arg4[%c0_24, %c0_25] : memref<8x128xf32, #tpu.memory_space<vmem>>, vector<8x128xf32>
      tpu.vector_store %arg4[%c0_24, %c0_25], %53 {strides = array<i32>} : memref<8x128xf32, #tpu.memory_space<vmem>>, vector<8x128xf32>,
    } else {
    }
    return
  }
  func.func @transform_0(%arg0: i32) -> (i32, i32) {
    %c0_i32 = arith.constant 0 : i32
    %c0_i32_0 = arith.constant 0 : i32
    %c0_i32_1 = arith.constant 0 : i32
    return %c0_i32, %c0_i32_0 : i32, i32
  }
  func.func @transform_1(%arg0: i32) -> (i32, i32) {
    %c0_i32 = arith.constant 0 : i32
    %c0_i32_0 = arith.constant 0 : i32
    return %arg0, %c0_i32 : i32, i32
  }
  func.func @transform_2(%arg0: i32) -> (i32, i32) {
    %c0_i32 = arith.constant 0 : i32
    %c0_i32_0 = arith.constant 0 : i32
    return %arg0, %c0_i32 : i32, i32
  }
  func.func @transform_3(%arg0: i32) -> (i32, i32) {
    %c0_i32 = arith.constant 0 : i32
    %c0_i32_0 = arith.constant 0 : i32
    %c0_i32_1 = arith.constant 0 : i32
    return %c0_i32, %c0_i32_0 : i32, i32
  }
}

</mosaic_0001>

<llo_original>
// kernel: tpu_custom_call.1
$region0: #{tpu_custom_call.1}
  #allocation0 [shape = 'u32[]', space=smem, size = 0x4, offset = 0x4, fixed_abs, tag = 'smem constant byte address 0x4 - core index']
  #allocation1 [shape = 'u32[144,128]{1,0:T(1,128)}', space=vmem, size = 0x12000, scoped, tag = 'internal scratch']
  #allocation2 [shape = 'f32[8,128]{1,0:T(8,128)}', space=vmem, size = 0x1000, scoped, tag = 'scratch operand']
  #allocation3 [shape = 'f32[8,128]{1,0:T(8,128)}', space=vmem, size = 0x1000, scoped, tag = 'scratch operand']
  #allocation4 [shape = 'f32[8,128]{1,0:T(8,128)}', space=vmem, size = 0x1000, scoped, tag = 'scratch operand']
  %s0 = inlined_call_operand.hbm [shape: f32[8,128], index: 0, kind: input, shape index: {}]
  %s1 = inlined_call_operand.hbm [shape: f32[8,128], index: 1, kind: input, shape index: {}]
  %s2 = inlined_call_operand.hbm [shape: f32[8,128], index: 2, kind: input, shape index: {}]
  %s3 = inlined_call_operand.hbm [shape: f32[8,128], index: 3, kind: output, shape index: {}]
  %s4 = sld [smem:[#allocation0]]
  $region42: #{tpu_custom_call.1} parent=0
    _
  %s6 = ssub.s32 1, %s4
  %s7 = scalar_select 0, %s6, %s4
  $region1: #{tpu_custom_call.1} parent=0
    #allocation5 [shape = 'u8[4096]{0}', space=vmem, size = 0x1000, scoped, tag = 'input window, operand 0, single buffered']
    #allocation6 [shape = 's32[1]{0}', space=sflag, size = 0x4, scoped, tag = 'scoped memory for tpu_custom_call.1']
    #allocation7 [shape = 's32[1]{0}', space=sflag, size = 0x4, scoped, tag = 'scoped memory for tpu_custom_call.1']
    #allocation8 [shape = 'u8[4096]{0}', space=vmem, size = 0x1000, scoped, tag = 'input window, operand 1, single buffered']
    #allocation9 [shape = 's32[1]{0}', space=sflag, size = 0x4, scoped, tag = 'scoped memory for tpu_custom_call.1']
    #allocation10 [shape = 'u8[4096]{0}', space=vmem, size = 0x1000, scoped, tag = 'input window, operand 2, single buffered']
    #allocation11 [shape = 'u8[4096]{0}', space=vmem, size = 0x1000, scoped, tag = 'output window, operand 0, single buffered']
    %8 = vsyncpa [#allocation6], 0
    %9 = vsyncpa [#allocation9], 0
    %10 = vsyncpa [#allocation7], 0
    // Predicated region
    $region2: #{tpu_custom_call.1} parent=1 // pred_check
      _
    $region3: #{tpu_custom_call.1} parent=1 // pred_check_branch
      %12 = sbr.rel (0) target = $region5
    $region4: #{tpu_custom_call.1} parent=1 // pred_region
      %s14 = ssub.s32 128, 128
      %15 = vsyncadd [#allocation6], %s14
      %s17 = sshll.u32 [#allocation5], 4
      %s18 = int_to_ptr.vmem [resolvable:$true] %s17
      %20 = dma.hbm_to_vmem [thread:$0]  %s0, 128, %s18, [#allocation6]
    $region5: #{tpu_custom_call.1} parent=1 // pred_fallthru
      _
    // Predicated region
    $region6: #{tpu_custom_call.1} parent=1 // pred_check
      _
    $region7: #{tpu_custom_call.1} parent=1 // pred_check_branch
      %22 = sbr.rel (0) target = $region9
    $region8: #{tpu_custom_call.1} parent=1 // pred_region
      %s24 = ssub.s32 128, 128
      %25 = vsyncadd [#allocation9], %s24
      %s27 = sshll.u32 [#allocation8], 4
      %s28 = int_to_ptr.vmem [resolvable:$true] %s27
      %30 = dma.hbm_to_vmem [thread:$0]  %s1, 128, %s28, [#allocation9]
    $region9: #{tpu_custom_call.1} parent=1 // pred_fallthru
      _
    // Predicated region
    $region10: #{tpu_custom_call.1} parent=1 // pred_check
      _
    $region11: #{tpu_custom_call.1} parent=1 // pred_check_branch
      %32 = sbr.rel (0) target = $region13
    $region12: #{tpu_custom_call.1} parent=1 // pred_region
      %s34 = ssub.s32 128, 128
      %35 = vsyncadd [#allocation9], %s34
      %s37 = sshll.u32 [#allocation10], 4
      %s38 = int_to_ptr.vmem [resolvable:$true] %s37
      %40 = dma.hbm_to_vmem [thread:$0]  %s2, 128, %s38, [#allocation9]
    $region13: #{tpu_custom_call.1} parent=1 // pred_fallthru
      _
    // Predicated region
    $region14: #{tpu_custom_call.1} parent=1 // pred_check
      _
    $region15: #{tpu_custom_call.1} parent=1 // pred_check_branch
      %42 = sbr.rel (0) target = $region17
    $region16: #{tpu_custom_call.1} parent=1 // pred_region
      %43 = dma.done [#allocation6], 128
    $region17: #{tpu_custom_call.1} parent=1 // pred_fallthru
      _
    // Predicated region
    $region18: #{tpu_custom_call.1} parent=1 // pred_check
      _
    $region19: #{tpu_custom_call.1} parent=1 // pred_check_branch
      %45 = sbr.rel (0) target = $region21
    $region20: #{tpu_custom_call.1} parent=1 // pred_region
      %46 = dma.done [#allocation9], 128
    $region21: #{tpu_custom_call.1} parent=1 // pred_fallthru
      _
    // Predicated region
    $region22: #{tpu_custom_call.1} parent=1 // pred_check
      _
    $region23: #{tpu_custom_call.1} parent=1 // pred_check_branch
      %48 = sbr.rel (0) target = $region25
    $region24: #{tpu_custom_call.1} parent=1 // pred_region
      %49 = dma.done [#allocation9], 128
    $region25: #{tpu_custom_call.1} parent=1 // pred_fallthru
      _
    %p50 = scmp.eq.s32.totalorder 0, 0
    // Predicated region
    $region26: #{tpu_custom_call.1} parent=1 // pred_check
      %p51 = pneg %p50
    $region27: #{tpu_custom_call.1} parent=1 // pred_check_branch
      %53 = sbr.rel (%p51) target = $region29
    $region28: #{tpu_custom_call.1} parent=1 // pred_region
      %v54 = vld [vmem:[#allocation5] sm:$0xff]
      %55 = vadd.xlane.f32.xlu0 %v54
      %v56 = vpop.xlane.xlu0 %55
      %v57 = vmul.f32 %v56, 0.0078125
      %v58 = vsub.f32 %v54, %v57
      %v59 = vmul.f32 %v58, %v58
      %60 = vadd.xlane.f32.xlu0 %v59
      %v61 = vpop.xlane.xlu0 %60
      %v62 = vmul.f32 %v61, 0.007874016
      %v63 = vrsqrt.pop %v62
      %v64 = vmul.f32 %v62, %v63
      %vm65 = vcmp.eq.f32.partialorder %v62, inf
      %v66 = vsel %vm65, %v62, %v64
      %vm67 = vcmp.eq.f32.partialorder %v62, 0.0
      %v68 = vand.u32 %v62, 2147483648
      %v69 = vsel %vm67, %v68, %v66
      %70 = vst [vmem:[#allocation2] sm:$0xff] %v57
      %71 = vst [vmem:[#allocation3] sm:$0xff] %v69
      %72 = vst [vmem:[#allocation4] sm:$0xff] inf
    $region29: #{tpu_custom_call.1} parent=1 // pred_fallthru
      _
    %v73 = vld [vmem:[#allocation8] sm:$0xff]
    %v74 = vld [vmem:[#allocation10] sm:$0xff]
    %v75 = vld [vmem:[#allocation2] sm:$0xff]
    %v77 = vcombine.high %v75, %v75
    %v79 = vunpack.c.l.s4 1966171168
    %v80 = vunpack.c.0.s8 %v79
    %v81 = vlaneseq
    %v82 = vshrl.u32 %v81, 7
    %v83 = vsub.s32 %v80, %v82
    %v84 = vrot.slane %v75, %v83
    %v86 = vunpack.c.l.s4 1966171168
    %v87 = vunpack.c.0.s8 %v86
    %v88 = vlaneseq
    %v89 = vshrl.u32 %v88, 7
    %v90 = vsub.s32 %v87, %v89
    %v91 = vrot.slane %v77, %v90
    %v92 = vcombine.high %v84, %v84
    %v93 = vcombine.high %v91, %v91
    %v95 = vunpack.c.l.s4 1966171168
    %v96 = vunpack.c.0.s8 %v95
    %v97 = vlaneseq
    %v98 = vshrl.u32 %v97, 7
    %v99 = vsub.s32 %v96, %v98
    %v100 = vrot.slane %v84, %v99
    %v102 = vunpack.c.l.s4 1966171168
    %v103 = vunpack.c.0.s8 %v102
    %v104 = vlaneseq
    %v105 = vshrl.u32 %v104, 7
    %v106 = vsub.s32 %v103, %v105
    %v107 = vrot.slane %v91, %v106
    %v109 = vunpack.c.l.s4 1966171168
    %v110 = vunpack.c.0.s8 %v109
    %v111 = vlaneseq
    %v112 = vshrl.u32 %v111, 7
    %v113 = vsub.s32 %v110, %v112
    %v114 = vrot.slane %v92, %v113
    %v116 = vunpack.c.l.s4 1966171168
    %v117 = vunpack.c.0.s8 %v116
    %v118 = vlaneseq
    %v119 = vshrl.u32 %v118, 7
    %v120 = vsub.s32 %v117, %v119
    %v121 = vrot.slane %v93, %v120
    %v122 = vcombine.high %v100, %v100
    %v123 = vcombine.high %v107, %v107
    %v124 = vcombine.high %v114, %v114
    %v125 = vcombine.high %v121, %v121
    %v126 = vlaneseq
    %v127 = vshrl.u32 %v126, 7
    %v128 = vsub.s32 0, %v127
    %v129 = vrot.slane %v100, %v128
    %v130 = vlaneseq
    %v131 = vshrl.u32 %v130, 7
    %v132 = vsub.s32 0, %v131
    %v133 = vrot.slane %v114, %v132
    %v134 = vlaneseq
    %v135 = vshrl.u32 %v134, 7
    %v136 = vsub.s32 0, %v135
    %v137 = vrot.slane %v122, %v136
    %v138 = vlaneseq
    %v139 = vshrl.u32 %v138, 7
    %v140 = vsub.s32 0, %v139
    %v141 = vrot.slane %v124, %v140
    %v142 = vlaneseq
    %v143 = vshrl.u32 %v142, 7
    %v144 = vsub.s32 0, %v143
    %v145 = vrot.slane %v107, %v144
    %v146 = vlaneseq
    %v147 = vshrl.u32 %v146, 7
    %v148 = vsub.s32 0, %v147
    %v149 = vrot.slane %v121, %v148
    %v150 = vlaneseq
    %v151 = vshrl.u32 %v150, 7
    %v152 = vsub.s32 0, %v151
    %v153 = vrot.slane %v123, %v152
    %v154 = vlaneseq
    %v155 = vshrl.u32 %v154, 7
    %v156 = vsub.s32 0, %v155
    %v157 = vrot.slane %v125, %v156
    %v166 = vsub.f32 %v129, %v73
    %v167 = vsub.f32 %v133, %v73
    %v168 = vsub.f32 %v137, %v73
    %v169 = vsub.f32 %v141, %v73
    %v170 = vsub.f32 %v145, %v73
    %v171 = vsub.f32 %v149, %v73
    %v172 = vsub.f32 %v153, %v73
    %v173 = vsub.f32 %v157, %v73
    %v174 = vld [vmem:[#allocation3] sm:$0xff]
    %v176 = vcombine.high %v174, %v174
    %v178 = vunpack.c.l.s4 1966171168
    %v179 = vunpack.c.0.s8 %v178
    %v180 = vlaneseq
    %v181 = vshrl.u32 %v180, 7
    %v182 = vsub.s32 %v179, %v181
    %v183 = vrot.slane %v174, %v182
    %v185 = vunpack.c.l.s4 1966171168
    %v186 = vunpack.c.0.s8 %v185
    %v187 = vlaneseq
    %v188 = vshrl.u32 %v187, 7
    %v189 = vsub.s32 %v186, %v188
    %v190 = vrot.slane %v176, %v189
    %v191 = vcombine.high %v183, %v183
    %v192 = vcombine.high %v190, %v190
    %v194 = vunpack.c.l.s4 1966171168
    %v195 = vunpack.c.0.s8 %v194
    %v196 = vlaneseq
    %v197 = vshrl.u32 %v196, 7
    %v198 = vsub.s32 %v195, %v197
    %v199 = vrot.slane %v183, %v198
    %v201 = vunpack.c.l.s4 1966171168
    %v202 = vunpack.c.0.s8 %v201
    %v203 = vlaneseq
    %v204 = vshrl.u32 %v203, 7
    %v205 = vsub.s32 %v202, %v204
    %v206 = vrot.slane %v190, %v205
    %v208 = vunpack.c.l.s4 1966171168
    %v209 = vunpack.c.0.s8 %v208
    %v210 = vlaneseq
    %v211 = vshrl.u32 %v210, 7
    %v212 = vsub.s32 %v209, %v211
    %v213 = vrot.slane %v191, %v212
    %v215 = vunpack.c.l.s4 1966171168
    %v216 = vunpack.c.0.s8 %v215
    %v217 = vlaneseq
    %v218 = vshrl.u32 %v217, 7
    %v219 = vsub.s32 %v216, %v218
    %v220 = vrot.slane %v192, %v219
    %v221 = vcombine.high %v199, %v199
    %v222 = vcombine.high %v206, %v206
    %v223 = vcombine.high %v213, %v213
    %v224 = vcombine.high %v220, %v220
    %v225 = vlaneseq
    %v226 = vshrl.u32 %v225, 7
    %v227 = vsub.s32 0, %v226
    %v228 = vrot.slane %v199, %v227
    %v229 = vlaneseq
    %v230 = vshrl.u32 %v229, 7
    %v231 = vsub.s32 0, %v230
    %v232 = vrot.slane %v213, %v231
    %v233 = vlaneseq
    %v234 = vshrl.u32 %v233, 7
    %v235 = vsub.s32 0, %v234
    %v236 = vrot.slane %v221, %v235
    %v237 = vlaneseq
    %v238 = vshrl.u32 %v237, 7
    %v239 = vsub.s32 0, %v238
    %v240 = vrot.slane %v223, %v239
    %v241 = vlaneseq
    %v242 = vshrl.u32 %v241, 7
    %v243 = vsub.s32 0, %v242
    %v244 = vrot.slane %v206, %v243
    %v245 = vlaneseq
    %v246 = vshrl.u32 %v245, 7
    %v247 = vsub.s32 0, %v246
    %v248 = vrot.slane %v220, %v247
    %v249 = vlaneseq
    %v250 = vshrl.u32 %v249, 7
    %v251 = vsub.s32 0, %v250
    %v252 = vrot.slane %v222, %v251
    %v253 = vlaneseq
    %v254 = vshrl.u32 %v253, 7
    %v255 = vsub.s32 0, %v254
    %v256 = vrot.slane %v224, %v255
    %v265 = vsub.f32 %v228, %v74
    %v266 = vsub.f32 %v232, %v74
    %v267 = vsub.f32 %v236, %v74
    %v268 = vsub.f32 %v240, %v74
    %v269 = vsub.f32 %v244, %v74
    %v270 = vsub.f32 %v248, %v74
    %v271 = vsub.f32 %v252, %v74
    %v272 = vsub.f32 %v256, %v74
    %v273 = vmul.f32 %v166, %v166
    %v274 = vmul.f32 %v167, %v167
    %v275 = vmul.f32 %v168, %v168
    %v276 = vmul.f32 %v169, %v169
    %v277 = vmul.f32 %v170, %v170
    %v278 = vmul.f32 %v171, %v171
    %v279 = vmul.f32 %v172, %v172
    %v280 = vmul.f32 %v173, %v173
    %v281 = vmul.f32 %v265, %v265
    %v282 = vmul.f32 %v266, %v266
    %v283 = vmul.f32 %v267, %v267
    %v284 = vmul.f32 %v268, %v268
    %v285 = vmul.f32 %v269, %v269
    %v286 = vmul.f32 %v270, %v270
    %v287 = vmul.f32 %v271, %v271
    %v288 = vmul.f32 %v272, %v272
    %v289 = vadd.f32 %v273, %v281
    %v290 = vadd.f32 %v274, %v282
    %v291 = vadd.f32 %v275, %v283
    %v292 = vadd.f32 %v276, %v284
    %v293 = vadd.f32 %v277, %v285
    %v294 = vadd.f32 %v278, %v286
    %v295 = vadd.f32 %v279, %v287
    %v296 = vadd.f32 %v280, %v288
    %v297 = vld [vmem:[#allocation4] sm:$0xff]
    %v298 = vrot.slane %v289, 4
    %v299 = vmin.f32 %v289, %v298
    %v300 = vrot.slane %v299, 2
    %v301 = vmin.f32 %v299, %v300
    %v302 = vrot.slane %v301, 1
    %v303 = vmin.f32 %v301, %v302
    %v304 = vrot.slane %v290, 4
    %v305 = vmin.f32 %v290, %v304
    %v306 = vrot.slane %v305, 2
    %v307 = vmin.f32 %v305, %v306
    %v308 = vrot.slane %v307, 1
    %v309 = vmin.f32 %v307, %v308
    %v310 = vrot.slane %v291, 4
    %v311 = vmin.f32 %v291, %v310
    %v312 = vrot.slane %v311, 2
    %v313 = vmin.f32 %v311, %v312
    %v314 = vrot.slane %v313, 1
    %v315 = vmin.f32 %v313, %v314
    %v316 = vrot.slane %v292, 4
    %v317 = vmin.f32 %v292, %v316
    %v318 = vrot.slane %v317, 2
    %v319 = vmin.f32 %v317, %v318
    %v320 = vrot.slane %v319, 1
    %v321 = vmin.f32 %v319, %v320
    %v322 = vrot.slane %v293, 4
    %v323 = vmin.f32 %v293, %v322
    %v324 = vrot.slane %v323, 2
    %v325 = vmin.f32 %v323, %v324
    %v326 = vrot.slane %v325, 1
    %v327 = vmin.f32 %v325, %v326
    %v328 = vrot.slane %v294, 4
    %v329 = vmin.f32 %v294, %v328
    %v330 = vrot.slane %v329, 2
    %v331 = vmin.f32 %v329, %v330
    %v332 = vrot.slane %v331, 1
    %v333 = vmin.f32 %v331, %v332
    %v334 = vrot.slane %v295, 4
    %v335 = vmin.f32 %v295, %v334
    %v336 = vrot.slane %v335, 2
    %v337 = vmin.f32 %v335, %v336
    %v338 = vrot.slane %v337, 1
    %v339 = vmin.f32 %v337, %v338
    %v340 = vrot.slane %v296, 4
    %v341 = vmin.f32 %v296, %v340
    %v342 = vrot.slane %v341, 2
    %v343 = vmin.f32 %v341, %v342
    %v344 = vrot.slane %v343, 1
    %v345 = vmin.f32 %v343, %v344
    %vm354 = vcmask 1041409
    %v355 = vsel %vm354, %v309, %v303
    %vm356 = vcmask 1042434
    %v357 = vsel %vm356, %v315, %v355
    %vm358 = vcmask 1043459
    %v359 = vsel %vm358, %v321, %v357
    %vm360 = vcmask 1044484
    %v361 = vsel %vm360, %v327, %v359
    %vm362 = vcmask 1045509
    %v363 = vsel %vm362, %v333, %v361
    %vm364 = vcmask 1046534
    %v365 = vsel %vm364, %v339, %v363
    %vm366 = vcmask 1047559
    %v367 = vsel %vm366, %v345, %v365
    %v369 = vmin.f32 %v297, %v367
    %370 = vst [vmem:[#allocation4] sm:$0xff] %v369
    // Predicated region
    $region30: #{tpu_custom_call.1} parent=1 // pred_check
      %p371 = pneg %p50
    $region31: #{tpu_custom_call.1} parent=1 // pred_check_branch
      %373 = sbr.rel (%p371) target = $region33
    $region32: #{tpu_custom_call.1} parent=1 // pred_region
      %v374 = vld [vmem:[#allocation4] sm:$0xff]
      %375 = vmin.xlane.f32.xlu0 %v374
      %v376 = vpop.xlane.xlu0 %375
      %v377 = vrsqrt.pop %v376
      %v378 = vmul.f32 %v376, %v377
      %vm379 = vcmp.eq.f32.partialorder %v376, inf
      %v380 = vsel %vm379, %v376, %v378
      %vm381 = vcmp.eq.f32.partialorder %v376, 0.0
      %v382 = vand.u32 %v376, 2147483648
      %v383 = vsel %vm381, %v382, %v380
      %v384 = vmul.f32 %v383, -10.0
      %v385 = vmul.f32 %v384, 1.442695
      %v386 = vpow.pop %v385
      %v387 = vlaneseq
      %v388 = vand.u32 %v387, 127
      %vm389 = vcmp.eq.s32.totalorder %v388, 0
      %v390 = vld [vmem:[#allocation2] sm:$0xff]
      %vm391 = vcmp.eq.s32.totalorder %v388, 1
      %v392 = vld [vmem:[#allocation3] sm:$0xff]
      %vm393 = vcmp.eq.s32.totalorder %v388, 2
      %vm394 = vcmp.eq.s32.totalorder %v388, 3
      %v395 = vsel %vm394, %v386, 0.0
      %v396 = vsel %vm393, %v383, %v395
      %v397 = vsel %vm391, %v392, %v396
      %v398 = vsel %vm389, %v390, %v397
      %399 = vst [vmem:[#allocation11] sm:$0xff] %v398
    $region33: #{tpu_custom_call.1} parent=1 // pred_fallthru
      _
    // Predicated region
    $region34: #{tpu_custom_call.1} parent=1 // pred_check
      _
    $region35: #{tpu_custom_call.1} parent=1 // pred_check_branch
      %401 = sbr.rel (0) target = $region37
    $region36: #{tpu_custom_call.1} parent=1 // pred_region
      %s403 = ssub.s32 128, 128
      %404 = vsyncadd [#allocation7], %s403
      %s406 = sshll.u32 [#allocation11], 4
      %s407 = int_to_ptr.vmem [resolvable:$true] %s406
      %409 = dma.vmem_to_hbm [thread:$0]  %s407, 128, %s3, [#allocation7]
    $region37: #{tpu_custom_call.1} parent=1 // pred_fallthru
      _
    // Predicated region
    $region38: #{tpu_custom_call.1} parent=1 // pred_check
      _
    $region39: #{tpu_custom_call.1} parent=1 // pred_check_branch
      %411 = sbr.rel (0) target = $region41
    $region40: #{tpu_custom_call.1} parent=1 // pred_region
      %412 = dma.done [#allocation7], 128
    $region41: #{tpu_custom_call.1} parent=1 // pred_fallthru
      _
    %413 = vsyncpa [#allocation6], 1
    %414 = vsyncpa [#allocation9], 1
    %415 = vsyncpa [#allocation7], 1

</llo_original>
